<compile_context>
chip_gen: v5e
topology: v5e:2x2
jax: 0.10.0
libtpu: 0.0.40
codegen_flags: <defaults>
</compile_context>

<pallas_src>
import functools

import jax
import jax.numpy as jnp
from jax.experimental import pallas as pl
from jax.experimental.pallas import tpu as pltpu


def _identity_kernel(x_ref, o_ref):
    # Trivial pass-through: the original module performs no computation.
    o_ref[...] = x_ref[...]


def _sublane_multiple(itemsize: int) -> int:
    """Native packed sublane tile: 8 rows of 32-bit, 16 of bf16, 32 of int8."""
    return max(8, 32 // max(1, itemsize))


def _target_tile_bytes() -> int:
    """Per-generation tile budget: big on 128 MiB VMEM (v5e/v6e), conservative
    on 64 MiB (v7x, 2 TCs).  Budget is 2 arrays x 2 pipeline buffers x tile."""
    try:
        vmem = pltpu.get_tpu_info().vmem_capacity_bytes
    except Exception:  # interpret mode / older jax: assume the small-VMEM chip
        vmem = 64 * 1024 * 1024
    if vmem >= 100 * 1024 * 1024:
        return 8 * 1024 * 1024   # v5e / v6e
    return 4 * 1024 * 1024       # v7x-class (64 MiB physical, 32 MiB scoped)


def _fold_lane_dense(total: int, itemsize: int):
    """Fold a flat length into (rows, lane) with lane a multiple of 128 and
    rows a multiple of the packed sublane tile (padding the tail if needed)."""
    sub = _sublane_multiple(itemsize)
    lane = 512
    while lane > 128 and total < sub * lane:
        lane //= 2            # 512 -> 256 -> 128, always a multiple of 128
    block = sub * lane
    padded = ((total + block - 1) // block) * block
    rows = padded // lane     # multiple of `sub` by construction
    return rows, lane, padded


def _choose_row_tile(rows: int, cols: int, itemsize: int, target_bytes: int) -> int:
    """Row tile: multiple of the packed sublane tile, divides rows, ~target_bytes."""
    sub = _sublane_multiple(itemsize)
    rows_cap = max(sub, target_bytes // max(1, cols * itemsize))
    tr = min(rows, rows_cap)
    tr = max(sub, (tr // sub) * sub)
    while rows % tr != 0:     # terminates at tr == sub (rows % sub == 0)
        tr -= sub
    return tr


@functools.partial(jax.jit, donate_argnums=0)
def identity_copy_pallas(x_nchw: jax.Array) -> jax.Array:
    """Aliased, lane-dense, pipelined identity copy (smoke test only)."""
    orig_shape = x_nchw.shape
    dtype = x_nchw.dtype
    itemsize = dtype.itemsize
    total = 1
    for d in orig_shape:
        total *= int(d)

    rows, cols, padded = _fold_lane_dense(total, itemsize)
    flat = x_nchw.reshape(total)
    if padded != total:
        flat = jnp.pad(flat, (0, padded - total))
    x2d = flat.reshape(rows, cols)

    tr = _choose_row_tile(rows, cols, itemsize, _target_tile_bytes())
    tile_bytes = tr * cols * itemsize
    # in + out windows, each double-buffered, plus headroom.
    vmem_limit = max(4 * tile_bytes + (4 << 20), 16 << 20)

    out2d = pl.pallas_call(
        _identity_kernel,
        out_shape=jax.ShapeDtypeStruct((rows, cols), dtype),
        grid=(rows // tr,),
        in_specs=[pl.BlockSpec((tr, cols), lambda i: (i, 0))],
        out_specs=pl.BlockSpec((tr, cols), lambda i: (i, 0)),
        input_output_aliases={0: 0},
        cost_estimate=pl.CostEstimate(
            flops=0,
            transcendentals=0,
            bytes_accessed=2 * padded * itemsize,
        ),
        compiler_params=pltpu.CompilerParams(
            dimension_semantics=("parallel",),
            vmem_limit_bytes=int(vmem_limit),
        ),
    )(x2d)

    out_flat = out2d.reshape(padded)
    if padded != total:
        out_flat = out_flat[:total]
    return out_flat.reshape(orig_shape)


class GameLoss:
    """JAX/Pallas port of the PyTorch GameLoss module."""

    def __init__(self, previousScore: int = 0):
        # The PyTorch __init__ registers no parameters; nothing to initialize.
        self.previousScore = previousScore

    def forward(self, x):
        # The reference forward has an empty body: it returns None and does no
        # work.  No kernel is launched here (zero HBM traffic).
        # TODO(synk): no loss computation exists in the reference to translate.
        return None

    __call__ = forward


if __name__ == "__main__":
    key = jax.random.PRNGKey(0)
    # Small NCHW input consistent with a conv-style environment observation.
    x = jax.random.normal(key, (2, 4, 16, 16), dtype=jnp.float32)

    # x is DONATED to the jitted copy below; keep a host copy for the check.
    x_host = jax.device_get(x)

    # Exercise the optimized Pallas identity kernel once and block on it.
    y = identity_copy_pallas(x)
    jax.block_until_ready(y)
    assert y.shape == x_host.shape and y.dtype == x_host.dtype
    assert bool(jnp.allclose(y, jnp.asarray(x_host)))

    # Module-level semantics: forward returns None, exactly like PyTorch,
    # and performs no HBM traffic / kernel launches.
    loss_mod = GameLoss(previousScore=0)
    result = loss_mod(y)
    assert result is None

    print("KERNEL_OK")
</pallas_src>

<mosaic_0001>
module attributes {stable_mosaic.version = 11 : i64} {
  func.func @_identity_kernel(%arg0: i32, %arg1: memref<8x256xf32, #tpu.memory_space<vmem>>, %arg2: memref<8x256xf32, #tpu.memory_space<vmem>>) attributes {dimension_semantics = [#tpu.dimension_semantics<parallel>], iteration_bounds = array<i64: 1>, scalar_prefetch = 0 : i64, scratch_operands = 0 : i64, tpu.core_type = #tpu.core_type<tc>, window_params = [{transform_indices = @transform_0, window_bounds = array<i64: 8, 256>}, {transform_indices = @transform_1, window_bounds = array<i64: 8, 256>}]} {
    %c0 = arith.constant 0 : index
    %c0_0 = arith.constant 0 : index
    %0 = vector.load %arg1[%c0, %c0_0] : memref<8x256xf32, #tpu.memory_space<vmem>>, vector<8x256xf32>
    %c0_1 = arith.constant 0 : index
    %c0_2 = arith.constant 0 : index
    %1 = vector.load %arg2[%c0_1, %c0_2] : memref<8x256xf32, #tpu.memory_space<vmem>>, vector<8x256xf32>
    tpu.vector_store %arg2[%c0_1, %c0_2], %0 {strides = array<i32>} : memref<8x256xf32, #tpu.memory_space<vmem>>, vector<8x256xf32>,
    return
  }
  func.func @transform_0(%arg0: i32) -> (i32, i32) {
    %c0_i32 = arith.constant 0 : i32
    %c0_i32_0 = arith.constant 0 : i32
    return %arg0, %c0_i32 : i32, i32
  }
  func.func @transform_1(%arg0: i32) -> (i32, i32) {
    %c0_i32 = arith.constant 0 : i32
    %c0_i32_0 = arith.constant 0 : i32
    return %arg0, %c0_i32 : i32, i32
  }
}

</mosaic_0001>

<llo_original>
// kernel: identity_copy_pallas.1
$region0: #{identity_copy_pallas.1}
  #allocation0 [shape = 'u32[]', space=smem, size = 0x4, offset = 0x4, fixed_abs, tag = 'smem constant byte address 0x4 - core index']
  #allocation1 [shape = 'u32[72,128]{1,0:T(1,128)}', space=vmem, size = 0x9000, scoped, tag = 'internal scratch']
  %s0 = inlined_call_operand.vmem [shape: f32[8,256], index: 0, kind: input, shape index: {}, may-alias: {0,1}]
  %s1 = inlined_call_operand.vmem [shape: f32[8,256], index: 1, kind: output, shape index: {}, may-alias: {0,1}]
  %s2 = sld [smem:[#allocation0]]
  $region14: #{identity_copy_pallas.1} parent=0
    _
  %s4 = ssub.s32 1, %s2
  %s5 = scalar_select 0, %s4, %s2
  // Predicated region
  $region2: #{identity_copy_pallas.1} parent=0 // pred_check
    _
  $region3: #{identity_copy_pallas.1} parent=0 // pred_check_branch
    %7 = sbr.rel (0) target = $region5
  $region4: #{identity_copy_pallas.1} parent=0 // pred_region
    _
  $region5: #{identity_copy_pallas.1} parent=0 // pred_fallthru
    _
  %v8 = vld [vmem:[%s0] sm:$0xff]
  %v9 = vld [vmem:[%s0 + $0x8] sm:$0xff]
  %10 = vst [vmem:[%s1] sm:$0xff] %v8
  %11 = vst [vmem:[%s1 + $0x8] sm:$0xff] %v9
  // Predicated region
  $region6: #{identity_copy_pallas.1} parent=0 // pred_check
    _
  $region7: #{identity_copy_pallas.1} parent=0 // pred_check_branch
    %13 = sbr.rel (0) target = $region9
  $region8: #{identity_copy_pallas.1} parent=0 // pred_region
    _
  $region9: #{identity_copy_pallas.1} parent=0 // pred_fallthru
    _
  // Predicated region
  $region10: #{identity_copy_pallas.1} parent=0 // pred_check
    _
  $region11: #{identity_copy_pallas.1} parent=0 // pred_check_branch
    %15 = sbr.rel (0) target = $region13
  $region12: #{identity_copy_pallas.1} parent=0 // pred_region
    _
  $region13: #{identity_copy_pallas.1} parent=0 // pred_fallthru
    _

</llo_original>
